<compile_context>
chip_gen: v5e
topology: v5e:2x2
jax: 0.10.0
libtpu: 0.0.40
codegen_flags: <defaults>
</compile_context>

<pallas_src>
import numpy as np
import jax
import jax.numpy as jnp
from jax.experimental import pallas as pl
from jax.experimental.pallas import tpu as pltpu


_STEP_OVERHEAD = 32.0  # per-grid-step overhead expressed in equivalent rows/cols


def _round_up(a, m):
    return -(-a // m) * m


def _cdiv(a, b):
    return -(-a // b)


def _dct_matrix_8():
    c = np.zeros((8, 8), dtype=np.float64)
    c[0, :] = np.sqrt(1.0 / 8.0)
    for i in range(1, 8):
        for j in range(8):
            c[i, j] = np.cos(np.pi * i * (2 * j + 1) / 16.0) * np.sqrt(2.0 / 8.0)
    return c


def _masked_projector(keep):
    # A = C^T @ diag(keep-mask) @ C (symmetric); A @ blk @ A == IDCT(mask * DCT(blk))
    # for the separable [0:keep, 0:keep] low-frequency mask.
    c = _dct_matrix_8()
    d = np.zeros(8, dtype=np.float64)
    d[:keep] = 1.0
    return c.T @ np.diag(d) @ c


def _device_caps():
    """(row_cap, col_cap, vmem_limit_bytes, n_tensorcores) per TPU generation."""
    kind = ""
    try:
        kind = jax.devices()[0].device_kind.lower()
    except Exception:
        pass
    if "v6" in kind:   # 128 MiB VMEM, high compute:BW ratio -> wider tiles
        return 256, 512, 64 * 1024 * 1024, 1
    if "v7" in kind:   # 64 MiB VMEM, 2 TensorCores/chip -> modest tiles, >=2 blocks
        return 256, 256, 32 * 1024 * 1024, 2
    return 256, 256, 32 * 1024 * 1024, 1   # v5e / unknown (keep Th+Tw ~ 512)


def _pick_tile(extent, cap, step):
    """Tile size (multiple of `step`, <= cap) and padded extent for one axis."""
    if extent <= cap:
        return extent, extent
    best = None
    for t in range(step, cap + 1, step):
        p = _round_up(extent, t)
        cost = p + _STEP_OVERHEAD * (p // t)
        if best is None or cost <= best[0]:
            best = (cost, t, p)
    return best[1], best[2]


def _jpeg_mask_kernel(x_ref, lhy_ref, lhuv_ref, rwy_ref, rwuv_ref, o_ref):
    # x_ref: (1, 3, Th, Tw) f32 or bf16 ; o_ref: (1, 3, Th, Tw) f32
    # lh*: (Th, Th) bf16 ; rw*: (Tw, Tw) bf16 (block-diagonal kron projectors).
    f32 = jnp.float32
    r = jnp.clip(x_ref[0, 0, :, :].astype(f32), -1.0, 1.0)
    g = jnp.clip(x_ref[0, 1, :, :].astype(f32), -1.0, 1.0)
    b = jnp.clip(x_ref[0, 2, :, :].astype(f32), -1.0, 1.0)

    # Work directly in the [-1,1] domain: the reference's [0,255] affine maps
    # cancel because the pipeline is linear and maps the constant-1 image to
    # itself (DC coefficient kept for Y, U and V).
    y = (0.299 * r + 0.587 * g + 0.114 * b).astype(jnp.bfloat16)
    u = (-0.1687 * r - 0.3313 * g + 0.5 * b).astype(jnp.bfloat16)
    v = (0.5 * r - 0.4187 * g - 0.0813 * b).astype(jnp.bfloat16)

    def sandwich(p, lh_ref, rw_ref):
        # Per-8x8-block A @ blk @ A, batched over all row/col blocks of the tile
        # via the block-diagonal matrices; bf16 operands, f32 accumulation.
        t = jnp.dot(p, rw_ref[...], preferred_element_type=jnp.float32)
        return jnp.dot(lh_ref[...], t.astype(jnp.bfloat16),
                       preferred_element_type=jnp.float32)

    yq = sandwich(y, lhy_ref, rwy_ref)
    uq = sandwich(u, lhuv_ref, rwuv_ref)
    vq = sandwich(v, lhuv_ref, rwuv_ref)

    o_ref[0, 0, :, :] = jnp.clip(yq + 1.40198758 * vq, -1.0, 1.0)
    o_ref[0, 1, :, :] = jnp.clip(yq - 0.344113281 * uq - 0.714103821 * vq, -1.0, 1.0)
    o_ref[0, 2, :, :] = jnp.clip(yq + 1.77197812 * uq, -1.0, 1.0)


def jpeg_mask(x, Q=50, subsample=0):
    """x: (N, 3, H, W) float in ~[-1, 1]. Returns (N, 3, H, W) float32."""
    del Q, subsample  # unused in the reference forward pass (kept for API parity)
    if x.dtype != jnp.float32 and x.dtype != jnp.bfloat16:
        x = x.astype(jnp.float32)
    N, C, H, W = x.shape
    assert C == 3

    row_cap, col_cap, vmem_limit, n_cores = _device_caps()

    Hp8 = _round_up(H, 8)
    Wp8 = _round_up(W, 8)

    # Narrow images: fold batch elements into the lane dim (each element spans a
    # multiple-of-8 column range, so the block-diagonal transform never mixes them).
    fold = 1
    if Wp8 < 128:
        for d in range(1, N + 1):
            if N % d == 0 and d * Wp8 <= col_cap:
                fold = d
    Nk = N // fold
    Wf = fold * Wp8

    Th, Hp = _pick_tile(Hp8, row_cap, 8)
    Tw, Wp = _pick_tile(Wf, col_cap, 128)

    # v7x: make sure both TensorCores get at least one block.
    if n_cores > 1 and Nk * (Hp // Th) * (Wp // Tw) < n_cores and Hp8 >= 64 * n_cores:
        Th = _round_up(_cdiv(Hp8, n_cores), 8)
        Hp = _round_up(Hp8, Th)

    pad_h = Hp - H
    pad_w = (Wp8 - W) if fold > 1 else (Wp - W)

    if pad_h or pad_w or fold > 1:
        # A pad / repack pass happens anyway -> ship bf16 to the kernel (cast fuses
        # into this pass and halves the kernel's input HBM stream).
        xk = x.astype(jnp.bfloat16)
        if pad_h or pad_w:
            # -1 padding: the reference zero-pads in the [0,255] domain, which is
            # exactly -1 in the [-1,1] domain the kernel works in.
            xk = jnp.pad(xk, ((0, 0), (0, 0), (0, pad_h), (0, pad_w)),
                         constant_values=-1.0)
        if fold > 1:
            xk = (xk.reshape(Nk, fold, 3, Hp, Wp8)
                    .transpose(0, 2, 3, 1, 4)
                    .reshape(Nk, 3, Hp, Wp))
    else:
        xk = x  # no extra HBM pass; kernel reads the caller's array directly

    # Folded per-8x8-block DCT -> mask -> IDCT projectors, block-diagonal (kron)
    # over the tile, bf16 for the native MXU path.
    a_y = _masked_projector(5)    # Y keeps the 5x5 low-frequency corner
    a_uv = _masked_projector(3)   # U, V keep the 3x3 corner
    eye_r = np.eye(Th // 8)
    eye_c = np.eye(Tw // 8)
    lhy = jnp.asarray(np.kron(eye_r, a_y), dtype=jnp.bfloat16)
    lhuv = jnp.asarray(np.kron(eye_r, a_uv), dtype=jnp.bfloat16)
    rwy = jnp.asarray(np.kron(eye_c, a_y), dtype=jnp.bfloat16)
    rwuv = jnp.asarray(np.kron(eye_c, a_uv), dtype=jnp.bfloat16)

    grid = (Nk, Hp // Th, Wp // Tw)

    out = pl.pallas_call(
        _jpeg_mask_kernel,
        out_shape=jax.ShapeDtypeStruct((Nk, 3, Hp, Wp), jnp.float32),
        grid_spec=pltpu.PrefetchScalarGridSpec(
            num_scalar_prefetch=0,
            grid=grid,
            in_specs=[
                pl.BlockSpec((1, 3, Th, Tw), lambda n, i, j: (n, 0, i, j)),
                # Constant index_map -> fetched once; single-buffering them via
                # pipeline_mode=pl.Buffered(1) would save a little VMEM but is
                # unnecessary at these tile sizes, so it is skipped.
                pl.BlockSpec((Th, Th), lambda n, i, j: (0, 0)),
                pl.BlockSpec((Th, Th), lambda n, i, j: (0, 0)),
                pl.BlockSpec((Tw, Tw), lambda n, i, j: (0, 0)),
                pl.BlockSpec((Tw, Tw), lambda n, i, j: (0, 0)),
            ],
            out_specs=pl.BlockSpec((1, 3, Th, Tw), lambda n, i, j: (n, 0, i, j)),
        ),
        compiler_params=pltpu.CompilerParams(
            dimension_semantics=("parallel", "parallel", "parallel"),
            vmem_limit_bytes=vmem_limit,
        ),
    )(xk, lhy, lhuv, rwy, rwuv)

    if fold > 1:
        out = (out.reshape(Nk, 3, Hp, fold, Wp8)
                  .transpose(0, 3, 1, 2, 4)
                  .reshape(N, 3, Hp, Wp8))
    return out[:, :, :H, :W]


def _reference_numpy(x_np):
    """Faithful float64 numpy port of the PyTorch module's forward()."""
    x = np.clip(x_np.astype(np.float64), -1.0, 1.0)
    x = (x + 1.0) * 255.0 / 2.0
    N, _, H, W = x.shape
    ph = (8 - H % 8) % 8
    pw = (8 - W % 8) % 8
    xp = np.pad(x, ((0, 0), (0, 0), (0, ph), (0, pw)))
    Hp, Wp = H + ph, W + pw
    r, g, b = xp[:, 0], xp[:, 1], xp[:, 2]
    y = 0.299 * r + 0.587 * g + 0.114 * b
    u = -0.1687 * r - 0.3313 * g + 0.5 * b
    v = 0.5 * r - 0.4187 * g - 0.0813 * b
    c = _dct_matrix_8()

    def blk(ch, keep):
        m = np.zeros((8, 8))
        m[:keep, :keep] = 1.0
        out = np.zeros_like(ch)
        for n in range(N):
            for i in range(0, Hp, 8):
                for j in range(0, Wp, 8):
                    d = c @ ch[n, i:i + 8, j:j + 8] @ c.T
                    out[n, i:i + 8, j:j + 8] = c.T @ (d * m) @ c
        return out

    yq, uq, vq = blk(y, 5), blk(u, 3), blk(v, 3)
    r2 = yq + 1.40198758 * vq
    g2 = yq - 0.344113281 * uq - 0.714103821 * vq
    b2 = yq + 1.77197812 * uq
    rgb = np.stack([r2, g2, b2], axis=1)[:, :, :H, :W]
    return np.clip(rgb * 2.0 / 255.0 - 1.0, -1.0, 1.0)


if __name__ == "__main__":
    key = jax.random.PRNGKey(0)
    k1, k2, k3 = jax.random.split(key, 3)

    cases = [
        # batch -> lane fold path (narrow image, N folded into the lane dim)
        jax.random.uniform(k1, (2, 3, 16, 16), jnp.float32, -1.2, 1.2),
        # -1 padding + crop path (H, W not multiples of 8)
        jax.random.uniform(k2, (1, 3, 12, 20), jnp.float32, -1.2, 1.2),
        # direct NCHW f32 path (already tile-aligned, no pad / repack / cast)
        jax.random.uniform(k3, (1, 3, 16, 128), jnp.float32, -1.2, 1.2),
    ]

    for x in cases:
        out = jax.block_until_ready(jpeg_mask(x, Q=50, subsample=0))
        assert out.shape == x.shape and out.dtype == jnp.float32
        assert bool(jnp.all(jnp.isfinite(out)))
        ref = _reference_numpy(np.asarray(x))
        max_err = float(np.max(np.abs(np.asarray(out) - ref)))
        assert max_err < 0.1, f"max abs error vs reference too large: {max_err} (shape {x.shape})"

    print("KERNEL_OK")
</pallas_src>

<mosaic_0001>
module attributes {stable_mosaic.version = 11 : i64} {
  func.func @_jpeg_mask_kernel(%arg0: i32, %arg1: i32, %arg2: i32, %arg3: memref<1x3x16x32xbf16, #tpu.memory_space<vmem>>, %arg4: memref<16x16xbf16, #tpu.memory_space<vmem>>, %arg5: memref<16x16xbf16, #tpu.memory_space<vmem>>, %arg6: memref<32x32xbf16, #tpu.memory_space<vmem>>, %arg7: memref<32x32xbf16, #tpu.memory_space<vmem>>, %arg8: memref<1x3x16x32xf32, #tpu.memory_space<vmem>>) attributes {dimension_semantics = [#tpu.dimension_semantics<parallel>, #tpu.dimension_semantics<parallel>, #tpu.dimension_semantics<parallel>], iteration_bounds = array<i64: 1, 1, 1>, scalar_prefetch = 0 : i64, scratch_operands = 0 : i64, tpu.core_type = #tpu.core_type<tc>, window_params = [{transform_indices = @transform_0, window_bounds = array<i64: 1, 3, 16, 32>}, {pipeline_mode = #tpu.pipeline_mode<synchronous>, transform_indices = @transform_1, window_bounds = array<i64: 16, 16>}, {pipeline_mode = #tpu.pipeline_mode<synchronous>, transform_indices = @transform_2, window_bounds = array<i64: 16, 16>}, {pipeline_mode = #tpu.pipeline_mode<synchronous>, transform_indices = @transform_3, window_bounds = array<i64: 32, 32>}, {pipeline_mode = #tpu.pipeline_mode<synchronous>, transform_indices = @transform_4, window_bounds = array<i64: 32, 32>}, {transform_indices = @transform_5, window_bounds = array<i64: 1, 3, 16, 32>}]} {
    %c0 = arith.constant 0 : index
    %c0_0 = arith.constant 0 : index
    %c0_1 = arith.constant 0 : index
    %c0_2 = arith.constant 0 : index
    %0 = vector.load %arg3[%c0, %c0_0, %c0_1, %c0_2] : memref<1x3x16x32xbf16, #tpu.memory_space<vmem>>, vector<1x1x16x32xbf16>
    %1 = vector.shape_cast %0 : vector<1x1x16x32xbf16> to vector<16x32xbf16>
    %2 = arith.extf %1 : vector<16x32xbf16> to vector<16x32xf32>
    %cst = arith.constant -1.000000e+00 : f32
    %cst_3 = arith.constant 1.000000e+00 : f32
    %3 = vector.broadcast %cst : f32 to vector<16x32xf32>
    %4 = arith.maximumf %3, %2 : vector<16x32xf32>
    %5 = vector.broadcast %cst_3 : f32 to vector<16x32xf32>
    %6 = arith.minimumf %5, %4 : vector<16x32xf32>
    %c0_4 = arith.constant 0 : index
    %c1 = arith.constant 1 : index
    %c0_5 = arith.constant 0 : index
    %c0_6 = arith.constant 0 : index
    %7 = vector.load %arg3[%c0_4, %c1, %c0_5, %c0_6] : memref<1x3x16x32xbf16, #tpu.memory_space<vmem>>, vector<1x1x16x32xbf16>
    %8 = vector.shape_cast %7 : vector<1x1x16x32xbf16> to vector<16x32xbf16>
    %9 = arith.extf %8 : vector<16x32xbf16> to vector<16x32xf32>
    %cst_7 = arith.constant -1.000000e+00 : f32
    %cst_8 = arith.constant 1.000000e+00 : f32
    %10 = vector.broadcast %cst_7 : f32 to vector<16x32xf32>
    %11 = arith.maximumf %10, %9 : vector<16x32xf32>
    %12 = vector.broadcast %cst_8 : f32 to vector<16x32xf32>
    %13 = arith.minimumf %12, %11 : vector<16x32xf32>
    %c0_9 = arith.constant 0 : index
    %c2 = arith.constant 2 : index
    %c0_10 = arith.constant 0 : index
    %c0_11 = arith.constant 0 : index
    %14 = vector.load %arg3[%c0_9, %c2, %c0_10, %c0_11] : memref<1x3x16x32xbf16, #tpu.memory_space<vmem>>, vector<1x1x16x32xbf16>
    %15 = vector.shape_cast %14 : vector<1x1x16x32xbf16> to vector<16x32xbf16>
    %16 = arith.extf %15 : vector<16x32xbf16> to vector<16x32xf32>
    %cst_12 = arith.constant -1.000000e+00 : f32
    %cst_13 = arith.constant 1.000000e+00 : f32
    %17 = vector.broadcast %cst_12 : f32 to vector<16x32xf32>
    %18 = arith.maximumf %17, %16 : vector<16x32xf32>
    %19 = vector.broadcast %cst_13 : f32 to vector<16x32xf32>
    %20 = arith.minimumf %19, %18 : vector<16x32xf32>
    %cst_14 = arith.constant 2.990000e-01 : f32
    %21 = vector.broadcast %cst_14 : f32 to vector<16x32xf32>
    %22 = arith.mulf %21, %6 : vector<16x32xf32>
    %cst_15 = arith.constant 5.870000e-01 : f32
    %23 = vector.broadcast %cst_15 : f32 to vector<16x32xf32>
    %24 = arith.mulf %23, %13 : vector<16x32xf32>
    %25 = arith.addf %22, %24 : vector<16x32xf32>
    %cst_16 = arith.constant 1.140000e-01 : f32
    %26 = vector.broadcast %cst_16 : f32 to vector<16x32xf32>
    %27 = arith.mulf %26, %20 : vector<16x32xf32>
    %28 = arith.addf %25, %27 : vector<16x32xf32>
    %29 = arith.truncf %28 : vector<16x32xf32> to vector<16x32xbf16>
    %cst_17 = arith.constant -1.687000e-01 : f32
    %30 = vector.broadcast %cst_17 : f32 to vector<16x32xf32>
    %31 = arith.mulf %30, %6 : vector<16x32xf32>
    %cst_18 = arith.constant 3.313000e-01 : f32
    %32 = vector.broadcast %cst_18 : f32 to vector<16x32xf32>
    %33 = arith.mulf %32, %13 : vector<16x32xf32>
    %34 = arith.subf %31, %33 : vector<16x32xf32>
    %cst_19 = arith.constant 5.000000e-01 : f32
    %35 = vector.broadcast %cst_19 : f32 to vector<16x32xf32>
    %36 = arith.mulf %35, %20 : vector<16x32xf32>
    %37 = arith.addf %34, %36 : vector<16x32xf32>
    %38 = arith.truncf %37 : vector<16x32xf32> to vector<16x32xbf16>
    %cst_20 = arith.constant 5.000000e-01 : f32
    %39 = vector.broadcast %cst_20 : f32 to vector<16x32xf32>
    %40 = arith.mulf %39, %6 : vector<16x32xf32>
    %cst_21 = arith.constant 4.187000e-01 : f32
    %41 = vector.broadcast %cst_21 : f32 to vector<16x32xf32>
    %42 = arith.mulf %41, %13 : vector<16x32xf32>
    %43 = arith.subf %40, %42 : vector<16x32xf32>
    %cst_22 = arith.constant 0.0812999978 : f32
    %44 = vector.broadcast %cst_22 : f32 to vector<16x32xf32>
    %45 = arith.mulf %44, %20 : vector<16x32xf32>
    %46 = arith.subf %43, %45 : vector<16x32xf32>
    %47 = arith.truncf %46 : vector<16x32xf32> to vector<16x32xbf16>
    %c0_23 = arith.constant 0 : index
    %c0_24 = arith.constant 0 : index
    %48 = vector.load %arg6[%c0_23, %c0_24] : memref<32x32xbf16, #tpu.memory_space<vmem>>, vector<32x32xbf16>
    %cst_25 = arith.constant dense<0.000000e+00> : vector<16x32xf32>
    %49 = tpu.matmul %29, %48, %cst_25 {dimension_numbers = #tpu.dot_dimension_numbers<[1], [0], [0], [1], [0, 0, 1, 1], [], []>} : vector<16x32xbf16>, vector<32x32xbf16>, vector<16x32xf32> -> vector<16x32xf32>
    %c0_26 = arith.constant 0 : index
    %c0_27 = arith.constant 0 : index
    %50 = vector.load %arg4[%c0_26, %c0_27] : memref<16x16xbf16, #tpu.memory_space<vmem>>, vector<16x16xbf16>
    %51 = arith.truncf %49 : vector<16x32xf32> to vector<16x32xbf16>
    %cst_28 = arith.constant dense<0.000000e+00> : vector<16x32xf32>
    %52 = tpu.matmul %50, %51, %cst_28 {dimension_numbers = #tpu.dot_dimension_numbers<[1], [0], [0], [1], [0, 0, 1, 1], [], []>} : vector<16x16xbf16>, vector<16x32xbf16>, vector<16x32xf32> -> vector<16x32xf32>
    %c0_29 = arith.constant 0 : index
    %c0_30 = arith.constant 0 : index
    %53 = vector.load %arg7[%c0_29, %c0_30] : memref<32x32xbf16, #tpu.memory_space<vmem>>, vector<32x32xbf16>
    %cst_31 = arith.constant dense<0.000000e+00> : vector<16x32xf32>
    %54 = tpu.matmul %38, %53, %cst_31 {dimension_numbers = #tpu.dot_dimension_numbers<[1], [0], [0], [1], [0, 0, 1, 1], [], []>} : vector<16x32xbf16>, vector<32x32xbf16>, vector<16x32xf32> -> vector<16x32xf32>
    %c0_32 = arith.constant 0 : index
    %c0_33 = arith.constant 0 : index
    %55 = vector.load %arg5[%c0_32, %c0_33] : memref<16x16xbf16, #tpu.memory_space<vmem>>, vector<16x16xbf16>
    %56 = arith.truncf %54 : vector<16x32xf32> to vector<16x32xbf16>
    %cst_34 = arith.constant dense<0.000000e+00> : vector<16x32xf32>
    %57 = tpu.matmul %55, %56, %cst_34 {dimension_numbers = #tpu.dot_dimension_numbers<[1], [0], [0], [1], [0, 0, 1, 1], [], []>} : vector<16x16xbf16>, vector<16x32xbf16>, vector<16x32xf32> -> vector<16x32xf32>
    %c0_35 = arith.constant 0 : index
    %c0_36 = arith.constant 0 : index
    %58 = vector.load %arg7[%c0_35, %c0_36] : memref<32x32xbf16, #tpu.memory_space<vmem>>, vector<32x32xbf16>
    %cst_37 = arith.constant dense<0.000000e+00> : vector<16x32xf32>
    %59 = tpu.matmul %47, %58, %cst_37 {dimension_numbers = #tpu.dot_dimension_numbers<[1], [0], [0], [1], [0, 0, 1, 1], [], []>} : vector<16x32xbf16>, vector<32x32xbf16>, vector<16x32xf32> -> vector<16x32xf32>
    %c0_38 = arith.constant 0 : index
    %c0_39 = arith.constant 0 : index
    %60 = vector.load %arg5[%c0_38, %c0_39] : memref<16x16xbf16, #tpu.memory_space<vmem>>, vector<16x16xbf16>
    %61 = arith.truncf %59 : vector<16x32xf32> to vector<16x32xbf16>
    %cst_40 = arith.constant dense<0.000000e+00> : vector<16x32xf32>
    %62 = tpu.matmul %60, %61, %cst_40 {dimension_numbers = #tpu.dot_dimension_numbers<[1], [0], [0], [1], [0, 0, 1, 1], [], []>} : vector<16x16xbf16>, vector<16x32xbf16>, vector<16x32xf32> -> vector<16x32xf32>
    %cst_41 = arith.constant 1.40198755 : f32
    %63 = vector.broadcast %cst_41 : f32 to vector<16x32xf32>
    %64 = arith.mulf %63, %62 : vector<16x32xf32>
    %65 = arith.addf %52, %64 : vector<16x32xf32>
    %cst_42 = arith.constant -1.000000e+00 : f32
    %cst_43 = arith.constant 1.000000e+00 : f32
    %66 = vector.broadcast %cst_42 : f32 to vector<16x32xf32>
    %67 = arith.maximumf %66, %65 : vector<16x32xf32>
    %68 = vector.broadcast %cst_43 : f32 to vector<16x32xf32>
    %69 = arith.minimumf %68, %67 : vector<16x32xf32>
    %c0_44 = arith.constant 0 : index
    %c0_45 = arith.constant 0 : index
    %c0_46 = arith.constant 0 : index
    %c0_47 = arith.constant 0 : index
    %70 = vector.load %arg8[%c0_44, %c0_45, %c0_46, %c0_47] : memref<1x3x16x32xf32, #tpu.memory_space<vmem>>, vector<1x1x16x32xf32>
    %71 = vector.shape_cast %70 : vector<1x1x16x32xf32> to vector<16x32xf32>
    %72 = vector.shape_cast %69 : vector<16x32xf32> to vector<1x1x16x32xf32>
    tpu.vector_store %arg8[%c0_44, %c0_45, %c0_46, %c0_47], %72 {strides = array<i32>} : memref<1x3x16x32xf32, #tpu.memory_space<vmem>>, vector<1x1x16x32xf32>,
    %cst_48 = arith.constant 0.34411329 : f32
    %73 = vector.broadcast %cst_48 : f32 to vector<16x32xf32>
    %74 = arith.mulf %73, %57 : vector<16x32xf32>
    %75 = arith.subf %52, %74 : vector<16x32xf32>
    %cst_49 = arith.constant 0.714103818 : f32
    %76 = vector.broadcast %cst_49 : f32 to vector<16x32xf32>
    %77 = arith.mulf %76, %62 : vector<16x32xf32>
    %78 = arith.subf %75, %77 : vector<16x32xf32>
    %cst_50 = arith.constant -1.000000e+00 : f32
    %cst_51 = arith.constant 1.000000e+00 : f32
    %79 = vector.broadcast %cst_50 : f32 to vector<16x32xf32>
    %80 = arith.maximumf %79, %78 : vector<16x32xf32>
    %81 = vector.broadcast %cst_51 : f32 to vector<16x32xf32>
    %82 = arith.minimumf %81, %80 : vector<16x32xf32>
    %c0_52 = arith.constant 0 : index
    %c1_53 = arith.constant 1 : index
    %c0_54 = arith.constant 0 : index
    %c0_55 = arith.constant 0 : index
    %83 = vector.load %arg8[%c0_52, %c1_53, %c0_54, %c0_55] : memref<1x3x16x32xf32, #tpu.memory_space<vmem>>, vector<1x1x16x32xf32>
    %84 = vector.shape_cast %83 : vector<1x1x16x32xf32> to vector<16x32xf32>
    %85 = vector.shape_cast %82 : vector<16x32xf32> to vector<1x1x16x32xf32>
    tpu.vector_store %arg8[%c0_52, %c1_53, %c0_54, %c0_55], %85 {strides = array<i32>} : memref<1x3x16x32xf32, #tpu.memory_space<vmem>>, vector<1x1x16x32xf32>,
    %cst_56 = arith.constant 1.77197814 : f32
    %86 = vector.broadcast %cst_56 : f32 to vector<16x32xf32>
    %87 = arith.mulf %86, %57 : vector<16x32xf32>
    %88 = arith.addf %52, %87 : vector<16x32xf32>
    %cst_57 = arith.constant -1.000000e+00 : f32
    %cst_58 = arith.constant 1.000000e+00 : f32
    %89 = vector.broadcast %cst_57 : f32 to vector<16x32xf32>
    %90 = arith.maximumf %89, %88 : vector<16x32xf32>
    %91 = vector.broadcast %cst_58 : f32 to vector<16x32xf32>
    %92 = arith.minimumf %91, %90 : vector<16x32xf32>
    %c0_59 = arith.constant 0 : index
    %c2_60 = arith.constant 2 : index
    %c0_61 = arith.constant 0 : index
    %c0_62 = arith.constant 0 : index
    %93 = vector.load %arg8[%c0_59, %c2_60, %c0_61, %c0_62] : memref<1x3x16x32xf32, #tpu.memory_space<vmem>>, vector<1x1x16x32xf32>
    %94 = vector.shape_cast %93 : vector<1x1x16x32xf32> to vector<16x32xf32>
    %95 = vector.shape_cast %92 : vector<16x32xf32> to vector<1x1x16x32xf32>
    tpu.vector_store %arg8[%c0_59, %c2_60, %c0_61, %c0_62], %95 {strides = array<i32>} : memref<1x3x16x32xf32, #tpu.memory_space<vmem>>, vector<1x1x16x32xf32>,
    return
  }
  func.func @transform_0(%arg0: i32, %arg1: i32, %arg2: i32) -> (i32, i32, i32, i32) {
    %c0_i32 = arith.constant 0 : i32
    %c0_i32_0 = arith.constant 0 : i32
    return %arg0, %c0_i32, %arg1, %arg2 : i32, i32, i32, i32
  }
  func.func @transform_1(%arg0: i32, %arg1: i32, %arg2: i32) -> (i32, i32) {
    %c0_i32 = arith.constant 0 : i32
    %c0_i32_0 = arith.constant 0 : i32
    %c0_i32_1 = arith.constant 0 : i32
    return %c0_i32, %c0_i32_0 : i32, i32
  }
  func.func @transform_2(%arg0: i32, %arg1: i32, %arg2: i32) -> (i32, i32) {
    %c0_i32 = arith.constant 0 : i32
    %c0_i32_0 = arith.constant 0 : i32
    %c0_i32_1 = arith.constant 0 : i32
    return %c0_i32, %c0_i32_0 : i32, i32
  }
  func.func @transform_3(%arg0: i32, %arg1: i32, %arg2: i32) -> (i32, i32) {
    %c0_i32 = arith.constant 0 : i32
    %c0_i32_0 = arith.constant 0 : i32
    %c0_i32_1 = arith.constant 0 : i32
    return %c0_i32, %c0_i32_0 : i32, i32
  }
  func.func @transform_4(%arg0: i32, %arg1: i32, %arg2: i32) -> (i32, i32) {
    %c0_i32 = arith.constant 0 : i32
    %c0_i32_0 = arith.constant 0 : i32
    %c0_i32_1 = arith.constant 0 : i32
    return %c0_i32, %c0_i32_0 : i32, i32
  }
  func.func @transform_5(%arg0: i32, %arg1: i32, %arg2: i32) -> (i32, i32, i32, i32) {
    %c0_i32 = arith.constant 0 : i32
    %c0_i32_0 = arith.constant 0 : i32
    return %arg0, %c0_i32, %arg1, %arg2 : i32, i32, i32, i32
  }
}

</mosaic_0001>

<llo_original>
// kernel: tpu_custom_call.1
$region0: #{tpu_custom_call.1}
  #allocation0 [shape = 'u32[]', space=smem, size = 0x4, offset = 0x4, fixed_abs, tag = 'smem constant byte address 0x4 - core index']
  #allocation1 [shape = 'u32[72,128]{1,0:T(1,128)}', space=vmem, size = 0x9000, scoped, tag = 'internal scratch']
  %s0 = inlined_call_operand.hbm [shape: bf16[1,3,16,32], index: 0, kind: input, shape index: {}]
  %s1 = inlined_call_operand.hbm [shape: bf16[16,16], index: 1, kind: input, shape index: {}]
  %s2 = inlined_call_operand.hbm [shape: bf16[16,16], index: 2, kind: input, shape index: {}]
  %s3 = inlined_call_operand.hbm [shape: bf16[32,32], index: 3, kind: input, shape index: {}]
  %s4 = inlined_call_operand.hbm [shape: bf16[32,32], index: 4, kind: input, shape index: {}]
  %s5 = inlined_call_operand.hbm [shape: f32[1,3,16,32], index: 5, kind: output, shape index: {}]
  %s6 = sld [smem:[#allocation0]]
  $region50: #{tpu_custom_call.1} parent=0
    _
  %s8 = ssub.s32 1, %s6
  %s9 = scalar_select 0, %s8, %s6
  $region1: #{tpu_custom_call.1} parent=0
    #allocation2 [shape = 'u8[12288]{0}', space=vmem, size = 0x3000, scoped, tag = 'input window, operand 0, single buffered']
    #allocation3 [shape = 's32[1]{0}', space=sflag, size = 0x4, scoped, tag = 'scoped memory for tpu_custom_call.1']
    #allocation4 [shape = 's32[1]{0}', space=sflag, size = 0x4, scoped, tag = 'scoped memory for tpu_custom_call.1']
    #allocation5 [shape = 'u8[4096]{0}', space=vmem, size = 0x1000, scoped, tag = 'input window, operand 1, single buffered']
    #allocation6 [shape = 's32[1]{0}', space=sflag, size = 0x4, scoped, tag = 'scoped memory for tpu_custom_call.1']
    #allocation7 [shape = 'u8[4096]{0}', space=vmem, size = 0x1000, scoped, tag = 'input window, operand 2, single buffered']
    #allocation8 [shape = 'u8[8192]{0}', space=vmem, size = 0x2000, scoped, tag = 'input window, operand 3, single buffered']
    #allocation9 [shape = 's32[1]{0}', space=sflag, size = 0x4, scoped, tag = 'scoped memory for tpu_custom_call.1']
    #allocation10 [shape = 'u8[8192]{0}', space=vmem, size = 0x2000, scoped, tag = 'input window, operand 4, single buffered']
    #allocation11 [shape = 'u8[24576]{0}', space=vmem, size = 0x6000, scoped, tag = 'output window, operand 0, single buffered']
    %10 = vsyncpa [#allocation3], 0
    %11 = vsyncpa [#allocation6], 0
    %12 = vsyncpa [#allocation9], 0
    %13 = vsyncpa [#allocation4], 0
    // Predicated region
    $region2: #{tpu_custom_call.1} parent=1 // pred_check
      _
    $region3: #{tpu_custom_call.1} parent=1 // pred_check_branch
      %15 = sbr.rel (0) target = $region5
    $region4: #{tpu_custom_call.1} parent=1 // pred_region
      %17 = vsyncadd [#allocation3], 0
      %s18 = sshll.u32 %s0, 4
      %s19 = int_to_ptr.hbm [resolvable:$true] %s18
      %s20 = sshll.u32 [#allocation2], 4
      %s21 = int_to_ptr.vmem [resolvable:$true] %s20
      %26 = dma.hbm_to_vmem [thread:$0]  %s19, 384, %s21, [#allocation3], 64, 64, 4
    $region5: #{tpu_custom_call.1} parent=1 // pred_fallthru
      _
    // Predicated region
    $region6: #{tpu_custom_call.1} parent=1 // pred_check
      _
    $region7: #{tpu_custom_call.1} parent=1 // pred_check_branch
      %28 = sbr.rel (0) target = $region9
    $region8: #{tpu_custom_call.1} parent=1 // pred_region
      %30 = vsyncadd [#allocation6], 0
      %s31 = sshll.u32 %s1, 4
      %s32 = int_to_ptr.hbm [resolvable:$true] %s31
      %s33 = sshll.u32 [#allocation5], 4
      %s34 = int_to_ptr.vmem [resolvable:$true] %s33
      %39 = dma.hbm_to_vmem [thread:$0]  %s32, 128, %s34, [#allocation6], 64, 64, 4
    $region9: #{tpu_custom_call.1} parent=1 // pred_fallthru
      _
    // Predicated region
    $region10: #{tpu_custom_call.1} parent=1 // pred_check
      _
    $region11: #{tpu_custom_call.1} parent=1 // pred_check_branch
      %41 = sbr.rel (0) target = $region13
    $region12: #{tpu_custom_call.1} parent=1 // pred_region
      %43 = vsyncadd [#allocation6], 0
      %s44 = sshll.u32 %s2, 4
      %s45 = int_to_ptr.hbm [resolvable:$true] %s44
      %s46 = sshll.u32 [#allocation7], 4
      %s47 = int_to_ptr.vmem [resolvable:$true] %s46
      %52 = dma.hbm_to_vmem [thread:$0]  %s45, 128, %s47, [#allocation6], 64, 64, 4
    $region13: #{tpu_custom_call.1} parent=1 // pred_fallthru
      _
    // Predicated region
    $region14: #{tpu_custom_call.1} parent=1 // pred_check
      _
    $region15: #{tpu_custom_call.1} parent=1 // pred_check_branch
      %54 = sbr.rel (0) target = $region17
    $region16: #{tpu_custom_call.1} parent=1 // pred_region
      %56 = vsyncadd [#allocation9], 0
      %s57 = sshll.u32 %s3, 4
      %s58 = int_to_ptr.hbm [resolvable:$true] %s57
      %s59 = sshll.u32 [#allocation8], 4
      %s60 = int_to_ptr.vmem [resolvable:$true] %s59
      %65 = dma.hbm_to_vmem [thread:$0]  %s58, 256, %s60, [#allocation9], 64, 64, 4
    $region17: #{tpu_custom_call.1} parent=1 // pred_fallthru
      _
    // Predicated region
    $region18: #{tpu_custom_call.1} parent=1 // pred_check
      _
    $region19: #{tpu_custom_call.1} parent=1 // pred_check_branch
      %67 = sbr.rel (0) target = $region21
    $region20: #{tpu_custom_call.1} parent=1 // pred_region
      %69 = vsyncadd [#allocation9], 0
      %s70 = sshll.u32 %s4, 4
      %s71 = int_to_ptr.hbm [resolvable:$true] %s70
      %s72 = sshll.u32 [#allocation10], 4
      %s73 = int_to_ptr.vmem [resolvable:$true] %s72
      %78 = dma.hbm_to_vmem [thread:$0]  %s71, 256, %s73, [#allocation9], 64, 64, 4
    $region21: #{tpu_custom_call.1} parent=1 // pred_fallthru
      _
    // Predicated region
    $region22: #{tpu_custom_call.1} parent=1 // pred_check
      _
    $region23: #{tpu_custom_call.1} parent=1 // pred_check_branch
      %80 = sbr.rel (0) target = $region25
    $region24: #{tpu_custom_call.1} parent=1 // pred_region
      %82 = dma.done [#allocation3], 384
    $region25: #{tpu_custom_call.1} parent=1 // pred_fallthru
      _
    // Predicated region
    $region26: #{tpu_custom_call.1} parent=1 // pred_check
      _
    $region27: #{tpu_custom_call.1} parent=1 // pred_check_branch
      %84 = sbr.rel (0) target = $region29
    $region28: #{tpu_custom_call.1} parent=1 // pred_region
      %86 = dma.done [#allocation6], 128
    $region29: #{tpu_custom_call.1} parent=1 // pred_fallthru
      _
    // Predicated region
    $region30: #{tpu_custom_call.1} parent=1 // pred_check
      _
    $region31: #{tpu_custom_call.1} parent=1 // pred_check_branch
      %88 = sbr.rel (0) target = $region33
    $region32: #{tpu_custom_call.1} parent=1 // pred_region
      %90 = dma.done [#allocation6], 128
    $region33: #{tpu_custom_call.1} parent=1 // pred_fallthru
      _
    // Predicated region
    $region34: #{tpu_custom_call.1} parent=1 // pred_check
      _
    $region35: #{tpu_custom_call.1} parent=1 // pred_check_branch
      %92 = sbr.rel (0) target = $region37
    $region36: #{tpu_custom_call.1} parent=1 // pred_region
      %94 = dma.done [#allocation9], 256
    $region37: #{tpu_custom_call.1} parent=1 // pred_fallthru
      _
    // Predicated region
    $region38: #{tpu_custom_call.1} parent=1 // pred_check
      _
    $region39: #{tpu_custom_call.1} parent=1 // pred_check_branch
      %96 = sbr.rel (0) target = $region41
    $region40: #{tpu_custom_call.1} parent=1 // pred_region
      %98 = dma.done [#allocation9], 256
    $region41: #{tpu_custom_call.1} parent=1 // pred_fallthru
      _
    %v100 = vld [vmem:[#allocation2] sm:$0xf]
    %v101 = vld [vmem:[#allocation2 + $0x4] sm:$0xf]
    %v102 = vunpack.c.l.bf16 %v100
    %v103 = vunpack.c.l.bf16 %v101
    %v104 = vmax.f32 %v102, -1.0
    %v105 = vmax.f32 %v103, -1.0
    %v106 = vmin.f32 %v104, 1.0
    %v107 = vmin.f32 %v105, 1.0
    %s108 = scalar_lea.vmem [#allocation2], 8
    %v109 = vld [vmem:[%s108] sm:$0xf]
    %v110 = vld [vmem:[%s108 + $0x4] sm:$0xf]
    %v111 = vunpack.c.l.bf16 %v109
    %v112 = vunpack.c.l.bf16 %v110
    %v113 = vmax.f32 %v111, -1.0
    %v114 = vmax.f32 %v112, -1.0
    %v115 = vmin.f32 %v113, 1.0
    %v116 = vmin.f32 %v114, 1.0
    %s117 = scalar_lea.vmem [#allocation2], 16
    %v118 = vld [vmem:[%s117] sm:$0xf]
    %v119 = vld [vmem:[%s117 + $0x4] sm:$0xf]
    %v120 = vunpack.c.l.bf16 %v118
    %v121 = vunpack.c.l.bf16 %v119
    %v122 = vmax.f32 %v120, -1.0
    %v123 = vmax.f32 %v121, -1.0
    %v124 = vmin.f32 %v122, 1.0
    %v125 = vmin.f32 %v123, 1.0
    %v126 = vmul.f32 %v106, 0.299
    %v127 = vmul.f32 %v107, 0.299
    %v128 = vmul.f32 %v115, 0.587
    %v129 = vmul.f32 %v116, 0.587
    %v130 = vadd.f32 %v126, %v128
    %v131 = vadd.f32 %v127, %v129
    %v132 = vmul.f32 %v124, 0.114
    %v133 = vmul.f32 %v125, 0.114
    %v134 = vadd.f32 %v130, %v132
    %v135 = vadd.f32 %v131, %v133
    %v136 = vpack.c.bf16 %v135, %v134
    %v137 = vmul.f32 %v106, -0.1687
    %v138 = vmul.f32 %v107, -0.1687
    %v139 = vmul.f32 %v115, 0.3313
    %v140 = vmul.f32 %v116, 0.3313
    %v141 = vsub.f32 %v137, %v139
    %v142 = vsub.f32 %v138, %v140
    %v143 = vmul.f32 %v124, 0.5
    %v144 = vmul.f32 %v125, 0.5
    %v145 = vadd.f32 %v141, %v143
    %v146 = vadd.f32 %v142, %v144
    %v147 = vpack.c.bf16 %v146, %v145
    %v148 = vmul.f32 %v106, 0.5
    %v149 = vmul.f32 %v107, 0.5
    %v150 = vmul.f32 %v115, 0.4187
    %v151 = vmul.f32 %v116, 0.4187
    %v152 = vsub.f32 %v148, %v150
    %v153 = vsub.f32 %v149, %v151
    %v154 = vmul.f32 %v124, 0.0813
    %v155 = vmul.f32 %v125, 0.0813
    %v156 = vsub.f32 %v152, %v154
    %v157 = vsub.f32 %v153, %v155
    %v158 = vpack.c.bf16 %v157, %v156
    %v159 = vld [vmem:[#allocation8] sm:$0xf]
    %v160 = vld [vmem:[#allocation8 + $0x4] sm:$0xf]
    %v161 = vld [vmem:[#allocation8 + $0x8] sm:$0xf]
    %v162 = vld [vmem:[#allocation8 + $0xc] sm:$0xf]
    %v167 = vunpack.c.l.b16 %v159
    %v168 = vunpack.c.l.b16 %v160
    %v169 = vunpack.c.l.b16 %v161
    %v170 = vunpack.c.l.b16 %v162
    %v171 = vpack.c.b16 %v168, %v167
    %v172 = vpack.c.b16 %v170, %v169
    %vm175 = vcmask 261120
    %v177 = vsel %vm175, %v136, 0
    %179 = vmatpush.bf16.msra.mxu0 0
    %180 = vmatpush.bf16.msra.mxu0 0
    %181 = vmatpush.bf16.msra.mxu0 0
    %182 = vmatpush.bf16.msra.mxu0 0
    %183 = vmatpush.bf16.msra.mxu0 0
    %184 = vmatpush.bf16.msra.mxu0 0
    %185 = vmatpush.bf16.msra.mxu0 %v172
    %186 = vmatpush.bf16.msra.mxu0 %v171
    %187 = vmatmul.bf16.gmra.mxu0 %v177
    %v188 = vpop.f32.mrf.mxu0
    %v189 = vadd.f32 0.0, %v188
    %v190 = vpop.f32.mrf.mxu0
    %v191 = vadd.f32 0.0, %v190
    %192 = vdwg.mxu0
    %v193 = vld [vmem:[#allocation5] sm:$0xf]
    %v194 = vld [vmem:[#allocation5 + $0x4] sm:$0xf]
    %v195 = vpack.c.bf16 %v191, %v189
    %v198 = vunpack.c.l.b16 %v193
    %v199 = vunpack.c.l.b16 %v194
    %v200 = vpack.c.b16 %v199, %v198
    %vm201 = vcmask 130048
    %v203 = vsel %vm201, %v200, 0
    %205 = vmatpush.bf16.msra.mxu0 0
    %206 = vmatpush.bf16.msra.mxu0 0
    %207 = vmatpush.bf16.msra.mxu0 0
    %208 = vmatpush.bf16.msra.mxu0 0
    %209 = vmatpush.bf16.msra.mxu0 0
    %210 = vmatpush.bf16.msra.mxu0 0
    %211 = vmatpush.bf16.msra.mxu0 0
    %212 = vmatpush.bf16.msra.mxu0 %v195
    %213 = vmatmul.bf16.gmra.mxu0 %v203
    %v214 = vpop.f32.mrf.mxu0
    %v215 = vadd.f32 0.0, %v214
    %v216 = vpop.f32.mrf.mxu0
    %v217 = vadd.f32 0.0, %v216
    %218 = vdwg.mxu0
    %v219 = vld [vmem:[#allocation10] sm:$0xf]
    %v220 = vld [vmem:[#allocation10 + $0x4] sm:$0xf]
    %v221 = vld [vmem:[#allocation10 + $0x8] sm:$0xf]
    %v222 = vld [vmem:[#allocation10 + $0xc] sm:$0xf]
    %v227 = vunpack.c.l.b16 %v219
    %v228 = vunpack.c.l.b16 %v220
    %v229 = vunpack.c.l.b16 %v221
    %v230 = vunpack.c.l.b16 %v222
    %v231 = vpack.c.b16 %v228, %v227
    %v232 = vpack.c.b16 %v230, %v229
    %v236 = vsel %vm175, %v147, 0
    %238 = vmatpush.bf16.msra.mxu0 0
    %239 = vmatpush.bf16.msra.mxu0 0
    %240 = vmatpush.bf16.msra.mxu0 0
    %241 = vmatpush.bf16.msra.mxu0 0
    %242 = vmatpush.bf16.msra.mxu0 0
    %243 = vmatpush.bf16.msra.mxu0 0
    %244 = vmatpush.bf16.msra.mxu0 %v232
    %245 = vmatpush.bf16.msra.mxu0 %v231
    %246 = vmatmul.bf16.gmra.mxu0 %v236
    %v247 = vpop.f32.mrf.mxu0
    %v248 = vadd.f32 0.0, %v247
    %v249 = vpop.f32.mrf.mxu0
    %v250 = vadd.f32 0.0, %v249
    %251 = vdwg.mxu0
    %v252 = vld [vmem:[#allocation7] sm:$0xf]
    %v253 = vld [vmem:[#allocation7 + $0x4] sm:$0xf]
    %v254 = vpack.c.bf16 %v250, %v248
    %v257 = vunpack.c.l.b16 %v252
    %v258 = vunpack.c.l.b16 %v253
    %v259 = vpack.c.b16 %v258, %v257
    %v261 = vsel %vm201, %v259, 0
    %263 = vmatpush.bf16.msra.mxu0 0
    %264 = vmatpush.bf16.msra.mxu0 0
    %265 = vmatpush.bf16.msra.mxu0 0
    %266 = vmatpush.bf16.msra.mxu0 0
    %267 = vmatpush.bf16.msra.mxu0 0
    %268 = vmatpush.bf16.msra.mxu0 0
    %269 = vmatpush.bf16.msra.mxu0 0
    %270 = vmatpush.bf16.msra.mxu0 %v254
    %271 = vmatmul.bf16.gmra.mxu0 %v261
    %v272 = vpop.f32.mrf.mxu0
    %v273 = vadd.f32 0.0, %v272
    %v274 = vpop.f32.mrf.mxu0
    %v275 = vadd.f32 0.0, %v274
    %276 = vdwg.mxu0
    %v278 = vsel %vm175, %v158, 0
    %280 = vmatpush.bf16.msra.mxu0 0
    %281 = vmatpush.bf16.msra.mxu0 0
    %282 = vmatpush.bf16.msra.mxu0 0
    %283 = vmatpush.bf16.msra.mxu0 0
    %284 = vmatpush.bf16.msra.mxu0 0
    %285 = vmatpush.bf16.msra.mxu0 0
    %286 = vmatpush.bf16.msra.mxu0 %v232
    %287 = vmatpush.bf16.msra.mxu0 %v231
    %288 = vmatmul.bf16.gmra.mxu0 %v278
    %v289 = vpop.f32.mrf.mxu0
    %v290 = vadd.f32 0.0, %v289
    %v291 = vpop.f32.mrf.mxu0
    %v292 = vadd.f32 0.0, %v291
    %293 = vdwg.mxu0
    %v294 = vpack.c.bf16 %v292, %v290
    %295 = vmatpush.bf16.msra.mxu0 0
    %296 = vmatpush.bf16.msra.mxu0 0
    %297 = vmatpush.bf16.msra.mxu0 0
    %298 = vmatpush.bf16.msra.mxu0 0
    %299 = vmatpush.bf16.msra.mxu0 0
    %300 = vmatpush.bf16.msra.mxu0 0
    %301 = vmatpush.bf16.msra.mxu0 0
    %302 = vmatpush.bf16.msra.mxu0 %v294
    %303 = vmatmul.bf16.gmra.mxu0 %v261
    %v304 = vpop.f32.mrf.mxu0
    %v305 = vadd.f32 0.0, %v304
    %v306 = vpop.f32.mrf.mxu0
    %v307 = vadd.f32 0.0, %v306
    %308 = vdwg.mxu0
    %v309 = vmul.f32 %v305, 1.4019876
    %v310 = vmul.f32 %v307, 1.4019876
    %v311 = vadd.f32 %v215, %v309
    %v312 = vadd.f32 %v217, %v310
    %v313 = vmax.f32 %v311, -1.0
    %v314 = vmax.f32 %v312, -1.0
    %v315 = vmin.f32 %v313, 1.0
    %v316 = vmin.f32 %v314, 1.0
    %317 = vst.msk [vmem:[#allocation11] sm:$0xff] %vm175, %v315
    %318 = vst.msk [vmem:[#allocation11 + $0x8] sm:$0xff] %vm175, %v316
    %v319 = vmul.f32 %v273, 0.3441133
    %v320 = vmul.f32 %v275, 0.3441133
    %v321 = vsub.f32 %v215, %v319
    %v322 = vsub.f32 %v217, %v320
    %v323 = vmul.f32 %v305, 0.7141038
    %v324 = vmul.f32 %v307, 0.7141038
    %v325 = vsub.f32 %v321, %v323
    %v326 = vsub.f32 %v322, %v324
    %v327 = vmax.f32 %v325, -1.0
    %v328 = vmax.f32 %v326, -1.0
    %v329 = vmin.f32 %v327, 1.0
    %v330 = vmin.f32 %v328, 1.0
    %s331 = scalar_lea.vmem [#allocation11], 16
    %332 = vst.msk [vmem:[%s331] sm:$0xff] %vm175, %v329
    %333 = vst.msk [vmem:[%s331 + $0x8] sm:$0xff] %vm175, %v330
    %v334 = vmul.f32 %v273, 1.7719781
    %v335 = vmul.f32 %v275, 1.7719781
    %v336 = vadd.f32 %v215, %v334
    %v337 = vadd.f32 %v217, %v335
    %v338 = vmax.f32 %v336, -1.0
    %v339 = vmax.f32 %v337, -1.0
    %v340 = vmin.f32 %v338, 1.0
    %v341 = vmin.f32 %v339, 1.0
    %s342 = scalar_lea.vmem [#allocation11], 32
    %343 = vst.msk [vmem:[%s342] sm:$0xff] %vm175, %v340
    %344 = vst.msk [vmem:[%s342 + $0x8] sm:$0xff] %vm175, %v341
    // Predicated region
    $region42: #{tpu_custom_call.1} parent=1 // pred_check
      _
    $region43: #{tpu_custom_call.1} parent=1 // pred_check_branch
      %346 = sbr.rel (0) target = $region45
    $region44: #{tpu_custom_call.1} parent=1 // pred_region
      %348 = vsyncadd [#allocation4], 0
      %s349 = sshll.u32 [#allocation11], 4
      %s350 = int_to_ptr.vmem [resolvable:$true] %s349
      %s351 = sshll.u32 %s5, 4
      %s352 = int_to_ptr.hbm [resolvable:$true] %s351
      %357 = dma.vmem_to_hbm [thread:$0]  %s350, 768, %s352, [#allocation4], 128, 128, 8
    $region45: #{tpu_custom_call.1} parent=1 // pred_fallthru
      _
    // Predicated region
    $region46: #{tpu_custom_call.1} parent=1 // pred_check
      _
    $region47: #{tpu_custom_call.1} parent=1 // pred_check_branch
      %359 = sbr.rel (0) target = $region49
    $region48: #{tpu_custom_call.1} parent=1 // pred_region
      %361 = dma.done [#allocation4], 768
    $region49: #{tpu_custom_call.1} parent=1 // pred_fallthru
      _
    %362 = vsyncpa [#allocation3], 1
    %363 = vsyncpa [#allocation6], 1
    %364 = vsyncpa [#allocation9], 1
    %365 = vsyncpa [#allocation4], 1

</llo_original>
